<compile_context>
chip_gen: v6e
topology: v6e:2x2x1
jax: 0.10.0
libtpu: 0.0.40
codegen_flags: <defaults>
</compile_context>

<pallas_src>
import functools

import jax
import jax.numpy as jnp
from jax import lax
from jax.experimental import pallas as pl
from jax.experimental.pallas import tpu as pltpu


_MAX_UNROLL = 8  # cap on recurrence unrolling (perf-review item)


def _lstm_decoder_kernel(z_ref, w_ih_t_ref, w_hh_t_ref, b_gates_ref,
                         w_out_t_ref, b_out_ref, out_ref, hs_ref):
    """LSTM recurrence + deferred, lane-dense output projection, all in VMEM.

    z_ref       : (B, H)        f32
    w_ih_t_ref  : (H, 4H)       bf16  transposed weight_ih_l0, gate order i,f,o,g
    w_hh_t_ref  : (H, 4H)       bf16  transposed weight_hh_l0, gate order i,f,o,g
    b_gates_ref : (1, 4H)       f32   b_ih + b_hh folded, gate order i,f,o,g
    w_out_t_ref : (H, O_pad)    bf16  transposed Linear weight, zero-padded to 128 lanes
    b_out_ref   : (1, O_pad)    f32   Linear bias, zero-padded
    out_ref     : (B*T, O_pad)  f32   row b*T + t  ->  (batch b, timestep t)
    hs_ref      : (B*T, H)      f32   scratch: batch-major hidden-state history
    """
    B, H = z_ref.shape
    T = hs_ref.shape[0] // B

    # The input at every timestep is the same z, so the input->gate projection
    # is constant across time; hoist it (one MXU call instead of T).
    z16 = z_ref[...].astype(jnp.bfloat16)
    x_gates = (
        jnp.dot(z16, w_ih_t_ref[...], preferred_element_type=jnp.float32)
        + b_gates_ref[...]
    )  # (B, 4H) f32
    w_hh_t = w_hh_t_ref[...]  # loop-invariant (H, 4H) bf16

    def step(t, carry):
        h, c = carry  # f32 state; h re-cast to bf16 for the MXU each step
        gates = x_gates + jnp.dot(h.astype(jnp.bfloat16), w_hh_t,
                                  preferred_element_type=jnp.float32)
        # Permuted gate order (i, f, o, g): one sigmoid over the 3H slab
        # (offset 0 -> no pre-relayout), one tanh over the last H.
        sig = jax.nn.sigmoid(gates[:, :3 * H])
        g_g = jnp.tanh(gates[:, 3 * H:])
        i_g = sig[:, 0 * H:1 * H]
        f_g = sig[:, 1 * H:2 * H]
        o_g = sig[:, 2 * H:3 * H]
        c_new = f_g * c + i_g * g_g
        h_new = o_g * jnp.tanh(c_new)
        # Record h_t in batch-major order (row b*T + t) so the deferred
        # projection emits rows already in (b, t) order -- no transpose later.
        # These stores are off the recurrence critical path; the per-b write
        # is kept only for layout (B is static and tiny here).
        for b in range(B):
            hs_ref[pl.ds(b * T + t, 1), :] = h_new[b:b + 1, :]
        return (h_new, c_new)

    h0 = jnp.zeros((B, H), jnp.float32)
    c0 = jnp.zeros((B, H), jnp.float32)
    if T <= _MAX_UNROLL:
        # Full static unroll: scratch-store offsets become compile-time
        # constants and the LLO scheduler sees across all steps.
        carry = (h0, c0)
        for t in range(T):
            carry = step(t, carry)
    else:
        # Capped unroll keeps instruction footprint / vreg live ranges bounded
        # at production seq_len while retaining cross-step scheduling slack.
        lax.fori_loop(0, T, step, (h0, c0), unroll=_MAX_UNROLL)

    # Deferred output projection: ONE well-shaped MXU pass over the whole
    # hidden-state history, bias hoisted out of any loop, fully lane-dense
    # (128-wide) store of the result.
    hs = hs_ref[...].astype(jnp.bfloat16)                        # (B*T, H)
    dec = jnp.dot(hs, w_out_t_ref[...],
                  preferred_element_type=jnp.float32) + b_out_ref[...]
    out_ref[...] = dec.astype(out_ref.dtype)                     # (B*T, O_pad)


def prepare_decoder_params(params):
    """One-time weight prep -- keep OUT of the per-call forward.

    Permutes gate blocks (PyTorch i,f,g,o -> i,f,o,g), transposes and casts
    MXU operands to bf16, folds the two LSTM biases, and zero-pads the output
    head to a 128-lane-dense width.
    """
    H = params["w_ih"].shape[1]
    O = params["w_out"].shape[0]
    o_pad = max(128, ((O + 127) // 128) * 128)

    def permute_gates(x):  # rows/entries (i, f, g, o) -> (i, f, o, g)
        i, f, g, o = jnp.split(x, 4, axis=0)
        return jnp.concatenate([i, f, o, g], axis=0)

    w_ih_t = permute_gates(params["w_ih"]).T.astype(jnp.bfloat16)    # (H, 4H)
    w_hh_t = permute_gates(params["w_hh"]).T.astype(jnp.bfloat16)    # (H, 4H)
    b_gates = permute_gates(params["b_ih"] + params["b_hh"]).reshape(1, 4 * H)

    w_out_t = jnp.zeros((H, o_pad), jnp.bfloat16)
    w_out_t = w_out_t.at[:, :O].set(params["w_out"].T.astype(jnp.bfloat16))
    b_out = jnp.zeros((1, o_pad), jnp.float32).at[:, :O].set(params["b_out"])

    return {"w_ih_t": w_ih_t, "w_hh_t": w_hh_t, "b_gates": b_gates,
            "w_out_t": w_out_t, "b_out": b_out}


@functools.partial(jax.jit, static_argnames=("seq_len", "output_size"))
def lstm_decoder_forward(z, kparams, seq_len, output_size):
    """z: (B, H) f32 -> decoded: (B, seq_len, output_size), batch-first."""
    B, H = z.shape
    o_pad = kparams["w_out_t"].shape[1]
    vmem = pl.BlockSpec(memory_space=pltpu.MemorySpace.VMEM)

    # NOTE(production sizing): everything is VMEM-resident in one invocation.
    # For large H / seq_len: (a) on v7x (64 MiB VMEM, 32 MiB scoped default)
    # time-chunk the hs scratch / output with a grid + BlockSpec, carry (h, c)
    # in scratch across "arbitrary" grid steps, keep loop-invariant weights
    # single-buffered, and add a leading batch grid axis with
    # dimension_semantics=("parallel", ...) to use both TensorCores;
    # (b) on v6e/v5e simply raise pltpu.CompilerParams(vmem_limit_bytes=...)
    # toward the 128 MiB physical VMEM before reaching for chunking.
    out = pl.pallas_call(
        _lstm_decoder_kernel,
        out_shape=jax.ShapeDtypeStruct((B * seq_len, o_pad), jnp.float32),
        in_specs=[vmem] * 6,
        out_specs=vmem,
        scratch_shapes=[pltpu.VMEM((B * seq_len, H), jnp.float32)],
    )(z, kparams["w_ih_t"], kparams["w_hh_t"], kparams["b_gates"],
      kparams["w_out_t"], kparams["b_out"])

    # Row b*seq_len + t -> (b, t): contiguous reshape (free) + narrow slice.
    return out.reshape(B, seq_len, o_pad)[:, :, :output_size]


def init_params(key, hidden_size, output_size):
    """Deterministic init matching PyTorch param shapes for
    nn.LSTM(hidden, hidden, 1) + nn.Linear(hidden, output)."""
    k = 1.0 / jnp.sqrt(jnp.float32(hidden_size))
    keys = jax.random.split(key, 6)
    u = lambda kk, shape: jax.random.uniform(kk, shape, jnp.float32, -k, k)
    return {
        "w_ih": u(keys[0], (4 * hidden_size, hidden_size)),
        "w_hh": u(keys[1], (4 * hidden_size, hidden_size)),
        "b_ih": u(keys[2], (4 * hidden_size,)),
        "b_hh": u(keys[3], (4 * hidden_size,)),
        "w_out": u(keys[4], (output_size, hidden_size)),
        "b_out": u(keys[5], (output_size,)),
    }


def _reference_forward(z, params, seq_len):
    """Pure-JAX f32 reference (PyTorch gate order, unpermuted weights)."""
    B, H = z.shape
    x_gates = z @ params["w_ih"].T + params["b_ih"] + params["b_hh"]
    h = jnp.zeros((B, H), jnp.float32)
    c = jnp.zeros((B, H), jnp.float32)
    outs = []
    for _ in range(seq_len):
        gates = x_gates + h @ params["w_hh"].T
        i_g = jax.nn.sigmoid(gates[:, 0 * H:1 * H])
        f_g = jax.nn.sigmoid(gates[:, 1 * H:2 * H])
        g_g = jnp.tanh(gates[:, 2 * H:3 * H])
        o_g = jax.nn.sigmoid(gates[:, 3 * H:4 * H])
        c = f_g * c + i_g * g_g
        h = o_g * jnp.tanh(c)
        outs.append(h @ params["w_out"].T + params["b_out"])
    return jnp.stack(outs, axis=1)  # (B, T, O)


if __name__ == "__main__":
    batch = 2
    hidden_size = 32
    output_size = 16
    seq_len = 8

    key = jax.random.PRNGKey(0)
    k_z, k_p = jax.random.split(key)
    z = jax.random.normal(k_z, (batch, hidden_size), jnp.float32)
    params = init_params(k_p, hidden_size, output_size)

    kparams = prepare_decoder_params(params)          # one-time weight prep
    out = lstm_decoder_forward(z, kparams, seq_len, output_size)
    out = jax.block_until_ready(out)

    ref = _reference_forward(z, params, seq_len)
    assert out.shape == (batch, seq_len, output_size)
    # bf16 MXU operands (f32 accumulate) -> tolerance loosened vs. pure-f32.
    assert jnp.allclose(out, ref, atol=5e-2, rtol=5e-2), "mismatch vs reference"

    print("KERNEL_OK")
</pallas_src>

<mosaic_0001>
module attributes {stable_mosaic.version = 11 : i64} {
  func.func @_lstm_decoder_kernel(%arg0: memref<2x32xf32, #tpu.memory_space<vmem>>, %arg1: memref<32x128xbf16, #tpu.memory_space<vmem>>, %arg2: memref<32x128xbf16, #tpu.memory_space<vmem>>, %arg3: memref<1x128xf32, #tpu.memory_space<vmem>>, %arg4: memref<32x128xbf16, #tpu.memory_space<vmem>>, %arg5: memref<1x128xf32, #tpu.memory_space<vmem>>, %arg6: memref<16x128xf32, #tpu.memory_space<vmem>>, %arg7: memref<16x32xf32, #tpu.memory_space<vmem>>) attributes {dimension_semantics = [], scalar_prefetch = 0 : i64, scratch_operands = 1 : i64, tpu.core_type = #tpu.core_type<tc>} {
    %c0 = arith.constant 0 : index
    %c0_0 = arith.constant 0 : index
    %0 = vector.load %arg0[%c0, %c0_0] : memref<2x32xf32, #tpu.memory_space<vmem>>, vector<2x32xf32>
    %1 = arith.truncf %0 : vector<2x32xf32> to vector<2x32xbf16>
    %c0_1 = arith.constant 0 : index
    %c0_2 = arith.constant 0 : index
    %2 = vector.load %arg1[%c0_1, %c0_2] : memref<32x128xbf16, #tpu.memory_space<vmem>>, vector<32x128xbf16>
    %cst = arith.constant dense<0.000000e+00> : vector<2x128xf32>
    %3 = tpu.matmul %1, %2, %cst {dimension_numbers = #tpu.dot_dimension_numbers<[1], [0], [0], [1], [0, 0, 1, 1], [], []>} : vector<2x32xbf16>, vector<32x128xbf16>, vector<2x128xf32> -> vector<2x128xf32>
    %c0_3 = arith.constant 0 : index
    %c0_4 = arith.constant 0 : index
    %4 = vector.load %arg3[%c0_3, %c0_4] : memref<1x128xf32, #tpu.memory_space<vmem>>, vector<1x128xf32>
    %5 = vector.broadcast %4 : vector<1x128xf32> to vector<2x128xf32>
    %6 = arith.addf %3, %5 : vector<2x128xf32>
    %c0_5 = arith.constant 0 : index
    %c0_6 = arith.constant 0 : index
    %7 = vector.load %arg2[%c0_5, %c0_6] : memref<32x128xbf16, #tpu.memory_space<vmem>>, vector<32x128xbf16>
    %cst_7 = arith.constant 0.000000e+00 : f32
    %8 = vector.broadcast %cst_7 : f32 to vector<2x32xf32>
    %cst_8 = arith.constant 0.000000e+00 : f32
    %9 = vector.broadcast %cst_8 : f32 to vector<2x32xf32>
    %10 = arith.truncf %8 : vector<2x32xf32> to vector<2x32xbf16>
    %cst_9 = arith.constant dense<0.000000e+00> : vector<2x128xf32>
    %11 = tpu.matmul %10, %7, %cst_9 {dimension_numbers = #tpu.dot_dimension_numbers<[1], [0], [0], [1], [0, 0, 1, 1], [], []>} : vector<2x32xbf16>, vector<32x128xbf16>, vector<2x128xf32> -> vector<2x128xf32>
    %12 = arith.addf %6, %11 : vector<2x128xf32>
    %13 = vector.extract_strided_slice %12 {offsets = [0, 0], sizes = [2, 96], strides = [1, 1]} : vector<2x128xf32> to vector<2x96xf32>
    %14 = arith.negf %13 : vector<2x96xf32>
    %15 = math.exp %14 : vector<2x96xf32>
    %cst_10 = arith.constant 1.000000e+00 : f32
    %16 = vector.broadcast %cst_10 : f32 to vector<2x96xf32>
    %17 = arith.addf %16, %15 : vector<2x96xf32>
    %18 = arith.divf %16, %17 : vector<2x96xf32>
    %19 = vector.extract_strided_slice %12 {offsets = [0, 96], sizes = [2, 32], strides = [1, 1]} : vector<2x128xf32> to vector<2x32xf32>
    %20 = math.tanh %19 : vector<2x32xf32>
    %21 = vector.extract_strided_slice %18 {offsets = [0, 0], sizes = [2, 32], strides = [1, 1]} : vector<2x96xf32> to vector<2x32xf32>
    %22 = vector.extract_strided_slice %18 {offsets = [0, 32], sizes = [2, 32], strides = [1, 1]} : vector<2x96xf32> to vector<2x32xf32>
    %23 = vector.extract_strided_slice %18 {offsets = [0, 64], sizes = [2, 32], strides = [1, 1]} : vector<2x96xf32> to vector<2x32xf32>
    %24 = arith.mulf %22, %9 : vector<2x32xf32>
    %25 = arith.mulf %21, %20 : vector<2x32xf32>
    %26 = arith.addf %24, %25 : vector<2x32xf32>
    %27 = math.tanh %26 : vector<2x32xf32>
    %28 = arith.mulf %23, %27 : vector<2x32xf32>
    %29 = vector.extract_strided_slice %28 {offsets = [0, 0], sizes = [1, 32], strides = [1, 1]} : vector<2x32xf32> to vector<1x32xf32>
    %c0_11 = arith.constant 0 : index
    %c0_12 = arith.constant 0 : index
    %30 = vector.load %arg7[%c0_11, %c0_12] : memref<16x32xf32, #tpu.memory_space<vmem>>, vector<1x32xf32>
    tpu.vector_store %arg7[%c0_11, %c0_12], %29 {strides = array<i32>} : memref<16x32xf32, #tpu.memory_space<vmem>>, vector<1x32xf32>,
    %31 = vector.extract_strided_slice %28 {offsets = [1, 0], sizes = [1, 32], strides = [1, 1]} : vector<2x32xf32> to vector<1x32xf32>
    %c8 = arith.constant 8 : index
    %c0_13 = arith.constant 0 : index
    %32 = vector.load %arg7[%c8, %c0_13] : memref<16x32xf32, #tpu.memory_space<vmem>>, vector<1x32xf32>
    tpu.vector_store %arg7[%c8, %c0_13], %31 {strides = array<i32>} : memref<16x32xf32, #tpu.memory_space<vmem>>, vector<1x32xf32>,
    %33 = arith.truncf %28 : vector<2x32xf32> to vector<2x32xbf16>
    %cst_14 = arith.constant dense<0.000000e+00> : vector<2x128xf32>
    %34 = tpu.matmul %33, %7, %cst_14 {dimension_numbers = #tpu.dot_dimension_numbers<[1], [0], [0], [1], [0, 0, 1, 1], [], []>} : vector<2x32xbf16>, vector<32x128xbf16>, vector<2x128xf32> -> vector<2x128xf32>
    %35 = arith.addf %6, %34 : vector<2x128xf32>
    %36 = vector.extract_strided_slice %35 {offsets = [0, 0], sizes = [2, 96], strides = [1, 1]} : vector<2x128xf32> to vector<2x96xf32>
    %37 = arith.negf %36 : vector<2x96xf32>
    %38 = math.exp %37 : vector<2x96xf32>
    %cst_15 = arith.constant 1.000000e+00 : f32
    %39 = vector.broadcast %cst_15 : f32 to vector<2x96xf32>
    %40 = arith.addf %39, %38 : vector<2x96xf32>
    %41 = arith.divf %39, %40 : vector<2x96xf32>
    %42 = vector.extract_strided_slice %35 {offsets = [0, 96], sizes = [2, 32], strides = [1, 1]} : vector<2x128xf32> to vector<2x32xf32>
    %43 = math.tanh %42 : vector<2x32xf32>
    %44 = vector.extract_strided_slice %41 {offsets = [0, 0], sizes = [2, 32], strides = [1, 1]} : vector<2x96xf32> to vector<2x32xf32>
    %45 = vector.extract_strided_slice %41 {offsets = [0, 32], sizes = [2, 32], strides = [1, 1]} : vector<2x96xf32> to vector<2x32xf32>
    %46 = vector.extract_strided_slice %41 {offsets = [0, 64], sizes = [2, 32], strides = [1, 1]} : vector<2x96xf32> to vector<2x32xf32>
    %47 = arith.mulf %45, %26 : vector<2x32xf32>
    %48 = arith.mulf %44, %43 : vector<2x32xf32>
    %49 = arith.addf %47, %48 : vector<2x32xf32>
    %50 = math.tanh %49 : vector<2x32xf32>
    %51 = arith.mulf %46, %50 : vector<2x32xf32>
    %52 = vector.extract_strided_slice %51 {offsets = [0, 0], sizes = [1, 32], strides = [1, 1]} : vector<2x32xf32> to vector<1x32xf32>
    %c1 = arith.constant 1 : index
    %c0_16 = arith.constant 0 : index
    %53 = vector.load %arg7[%c1, %c0_16] : memref<16x32xf32, #tpu.memory_space<vmem>>, vector<1x32xf32>
    tpu.vector_store %arg7[%c1, %c0_16], %52 {strides = array<i32>} : memref<16x32xf32, #tpu.memory_space<vmem>>, vector<1x32xf32>,
    %54 = vector.extract_strided_slice %51 {offsets = [1, 0], sizes = [1, 32], strides = [1, 1]} : vector<2x32xf32> to vector<1x32xf32>
    %c9 = arith.constant 9 : index
    %c0_17 = arith.constant 0 : index
    %55 = vector.load %arg7[%c9, %c0_17] : memref<16x32xf32, #tpu.memory_space<vmem>>, vector<1x32xf32>
    tpu.vector_store %arg7[%c9, %c0_17], %54 {strides = array<i32>} : memref<16x32xf32, #tpu.memory_space<vmem>>, vector<1x32xf32>,
    %56 = arith.truncf %51 : vector<2x32xf32> to vector<2x32xbf16>
    %cst_18 = arith.constant dense<0.000000e+00> : vector<2x128xf32>
    %57 = tpu.matmul %56, %7, %cst_18 {dimension_numbers = #tpu.dot_dimension_numbers<[1], [0], [0], [1], [0, 0, 1, 1], [], []>} : vector<2x32xbf16>, vector<32x128xbf16>, vector<2x128xf32> -> vector<2x128xf32>
    %58 = arith.addf %6, %57 : vector<2x128xf32>
    %59 = vector.extract_strided_slice %58 {offsets = [0, 0], sizes = [2, 96], strides = [1, 1]} : vector<2x128xf32> to vector<2x96xf32>
    %60 = arith.negf %59 : vector<2x96xf32>
    %61 = math.exp %60 : vector<2x96xf32>
    %cst_19 = arith.constant 1.000000e+00 : f32
    %62 = vector.broadcast %cst_19 : f32 to vector<2x96xf32>
    %63 = arith.addf %62, %61 : vector<2x96xf32>
    %64 = arith.divf %62, %63 : vector<2x96xf32>
    %65 = vector.extract_strided_slice %58 {offsets = [0, 96], sizes = [2, 32], strides = [1, 1]} : vector<2x128xf32> to vector<2x32xf32>
    %66 = math.tanh %65 : vector<2x32xf32>
    %67 = vector.extract_strided_slice %64 {offsets = [0, 0], sizes = [2, 32], strides = [1, 1]} : vector<2x96xf32> to vector<2x32xf32>
    %68 = vector.extract_strided_slice %64 {offsets = [0, 32], sizes = [2, 32], strides = [1, 1]} : vector<2x96xf32> to vector<2x32xf32>
    %69 = vector.extract_strided_slice %64 {offsets = [0, 64], sizes = [2, 32], strides = [1, 1]} : vector<2x96xf32> to vector<2x32xf32>
    %70 = arith.mulf %68, %49 : vector<2x32xf32>
    %71 = arith.mulf %67, %66 : vector<2x32xf32>
    %72 = arith.addf %70, %71 : vector<2x32xf32>
    %73 = math.tanh %72 : vector<2x32xf32>
    %74 = arith.mulf %69, %73 : vector<2x32xf32>
    %75 = vector.extract_strided_slice %74 {offsets = [0, 0], sizes = [1, 32], strides = [1, 1]} : vector<2x32xf32> to vector<1x32xf32>
    %c2 = arith.constant 2 : index
    %c0_20 = arith.constant 0 : index
    %76 = vector.load %arg7[%c2, %c0_20] : memref<16x32xf32, #tpu.memory_space<vmem>>, vector<1x32xf32>
    tpu.vector_store %arg7[%c2, %c0_20], %75 {strides = array<i32>} : memref<16x32xf32, #tpu.memory_space<vmem>>, vector<1x32xf32>,
    %77 = vector.extract_strided_slice %74 {offsets = [1, 0], sizes = [1, 32], strides = [1, 1]} : vector<2x32xf32> to vector<1x32xf32>
    %c10 = arith.constant 10 : index
    %c0_21 = arith.constant 0 : index
    %78 = vector.load %arg7[%c10, %c0_21] : memref<16x32xf32, #tpu.memory_space<vmem>>, vector<1x32xf32>
    tpu.vector_store %arg7[%c10, %c0_21], %77 {strides = array<i32>} : memref<16x32xf32, #tpu.memory_space<vmem>>, vector<1x32xf32>,
    %79 = arith.truncf %74 : vector<2x32xf32> to vector<2x32xbf16>
    %cst_22 = arith.constant dense<0.000000e+00> : vector<2x128xf32>
    %80 = tpu.matmul %79, %7, %cst_22 {dimension_numbers = #tpu.dot_dimension_numbers<[1], [0], [0], [1], [0, 0, 1, 1], [], []>} : vector<2x32xbf16>, vector<32x128xbf16>, vector<2x128xf32> -> vector<2x128xf32>
    %81 = arith.addf %6, %80 : vector<2x128xf32>
    %82 = vector.extract_strided_slice %81 {offsets = [0, 0], sizes = [2, 96], strides = [1, 1]} : vector<2x128xf32> to vector<2x96xf32>
    %83 = arith.negf %82 : vector<2x96xf32>
    %84 = math.exp %83 : vector<2x96xf32>
    %cst_23 = arith.constant 1.000000e+00 : f32
    %85 = vector.broadcast %cst_23 : f32 to vector<2x96xf32>
    %86 = arith.addf %85, %84 : vector<2x96xf32>
    %87 = arith.divf %85, %86 : vector<2x96xf32>
    %88 = vector.extract_strided_slice %81 {offsets = [0, 96], sizes = [2, 32], strides = [1, 1]} : vector<2x128xf32> to vector<2x32xf32>
    %89 = math.tanh %88 : vector<2x32xf32>
    %90 = vector.extract_strided_slice %87 {offsets = [0, 0], sizes = [2, 32], strides = [1, 1]} : vector<2x96xf32> to vector<2x32xf32>
    %91 = vector.extract_strided_slice %87 {offsets = [0, 32], sizes = [2, 32], strides = [1, 1]} : vector<2x96xf32> to vector<2x32xf32>
    %92 = vector.extract_strided_slice %87 {offsets = [0, 64], sizes = [2, 32], strides = [1, 1]} : vector<2x96xf32> to vector<2x32xf32>
    %93 = arith.mulf %91, %72 : vector<2x32xf32>
    %94 = arith.mulf %90, %89 : vector<2x32xf32>
    %95 = arith.addf %93, %94 : vector<2x32xf32>
    %96 = math.tanh %95 : vector<2x32xf32>
    %97 = arith.mulf %92, %96 : vector<2x32xf32>
    %98 = vector.extract_strided_slice %97 {offsets = [0, 0], sizes = [1, 32], strides = [1, 1]} : vector<2x32xf32> to vector<1x32xf32>
    %c3 = arith.constant 3 : index
    %c0_24 = arith.constant 0 : index
    %99 = vector.load %arg7[%c3, %c0_24] : memref<16x32xf32, #tpu.memory_space<vmem>>, vector<1x32xf32>
    tpu.vector_store %arg7[%c3, %c0_24], %98 {strides = array<i32>} : memref<16x32xf32, #tpu.memory_space<vmem>>, vector<1x32xf32>,
    %100 = vector.extract_strided_slice %97 {offsets = [1, 0], sizes = [1, 32], strides = [1, 1]} : vector<2x32xf32> to vector<1x32xf32>
    %c11 = arith.constant 11 : index
    %c0_25 = arith.constant 0 : index
    %101 = vector.load %arg7[%c11, %c0_25] : memref<16x32xf32, #tpu.memory_space<vmem>>, vector<1x32xf32>
    tpu.vector_store %arg7[%c11, %c0_25], %100 {strides = array<i32>} : memref<16x32xf32, #tpu.memory_space<vmem>>, vector<1x32xf32>,
    %102 = arith.truncf %97 : vector<2x32xf32> to vector<2x32xbf16>
    %cst_26 = arith.constant dense<0.000000e+00> : vector<2x128xf32>
    %103 = tpu.matmul %102, %7, %cst_26 {dimension_numbers = #tpu.dot_dimension_numbers<[1], [0], [0], [1], [0, 0, 1, 1], [], []>} : vector<2x32xbf16>, vector<32x128xbf16>, vector<2x128xf32> -> vector<2x128xf32>
    %104 = arith.addf %6, %103 : vector<2x128xf32>
    %105 = vector.extract_strided_slice %104 {offsets = [0, 0], sizes = [2, 96], strides = [1, 1]} : vector<2x128xf32> to vector<2x96xf32>
    %106 = arith.negf %105 : vector<2x96xf32>
    %107 = math.exp %106 : vector<2x96xf32>
    %cst_27 = arith.constant 1.000000e+00 : f32
    %108 = vector.broadcast %cst_27 : f32 to vector<2x96xf32>
    %109 = arith.addf %108, %107 : vector<2x96xf32>
    %110 = arith.divf %108, %109 : vector<2x96xf32>
    %111 = vector.extract_strided_slice %104 {offsets = [0, 96], sizes = [2, 32], strides = [1, 1]} : vector<2x128xf32> to vector<2x32xf32>
    %112 = math.tanh %111 : vector<2x32xf32>
    %113 = vector.extract_strided_slice %110 {offsets = [0, 0], sizes = [2, 32], strides = [1, 1]} : vector<2x96xf32> to vector<2x32xf32>
    %114 = vector.extract_strided_slice %110 {offsets = [0, 32], sizes = [2, 32], strides = [1, 1]} : vector<2x96xf32> to vector<2x32xf32>
    %115 = vector.extract_strided_slice %110 {offsets = [0, 64], sizes = [2, 32], strides = [1, 1]} : vector<2x96xf32> to vector<2x32xf32>
    %116 = arith.mulf %114, %95 : vector<2x32xf32>
    %117 = arith.mulf %113, %112 : vector<2x32xf32>
    %118 = arith.addf %116, %117 : vector<2x32xf32>
    %119 = math.tanh %118 : vector<2x32xf32>
    %120 = arith.mulf %115, %119 : vector<2x32xf32>
    %121 = vector.extract_strided_slice %120 {offsets = [0, 0], sizes = [1, 32], strides = [1, 1]} : vector<2x32xf32> to vector<1x32xf32>
    %c4 = arith.constant 4 : index
    %c0_28 = arith.constant 0 : index
    %122 = vector.load %arg7[%c4, %c0_28] : memref<16x32xf32, #tpu.memory_space<vmem>>, vector<1x32xf32>
    tpu.vector_store %arg7[%c4, %c0_28], %121 {strides = array<i32>} : memref<16x32xf32, #tpu.memory_space<vmem>>, vector<1x32xf32>,
    %123 = vector.extract_strided_slice %120 {offsets = [1, 0], sizes = [1, 32], strides = [1, 1]} : vector<2x32xf32> to vector<1x32xf32>
    %c12 = arith.constant 12 : index
    %c0_29 = arith.constant 0 : index
    %124 = vector.load %arg7[%c12, %c0_29] : memref<16x32xf32, #tpu.memory_space<vmem>>, vector<1x32xf32>
    tpu.vector_store %arg7[%c12, %c0_29], %123 {strides = array<i32>} : memref<16x32xf32, #tpu.memory_space<vmem>>, vector<1x32xf32>,
    %125 = arith.truncf %120 : vector<2x32xf32> to vector<2x32xbf16>
    %cst_30 = arith.constant dense<0.000000e+00> : vector<2x128xf32>
    %126 = tpu.matmul %125, %7, %cst_30 {dimension_numbers = #tpu.dot_dimension_numbers<[1], [0], [0], [1], [0, 0, 1, 1], [], []>} : vector<2x32xbf16>, vector<32x128xbf16>, vector<2x128xf32> -> vector<2x128xf32>
    %127 = arith.addf %6, %126 : vector<2x128xf32>
    %128 = vector.extract_strided_slice %127 {offsets = [0, 0], sizes = [2, 96], strides = [1, 1]} : vector<2x128xf32> to vector<2x96xf32>
    %129 = arith.negf %128 : vector<2x96xf32>
    %130 = math.exp %129 : vector<2x96xf32>
    %cst_31 = arith.constant 1.000000e+00 : f32
    %131 = vector.broadcast %cst_31 : f32 to vector<2x96xf32>
    %132 = arith.addf %131, %130 : vector<2x96xf32>
    %133 = arith.divf %131, %132 : vector<2x96xf32>
    %134 = vector.extract_strided_slice %127 {offsets = [0, 96], sizes = [2, 32], strides = [1, 1]} : vector<2x128xf32> to vector<2x32xf32>
    %135 = math.tanh %134 : vector<2x32xf32>
    %136 = vector.extract_strided_slice %133 {offsets = [0, 0], sizes = [2, 32], strides = [1, 1]} : vector<2x96xf32> to vector<2x32xf32>
    %137 = vector.extract_strided_slice %133 {offsets = [0, 32], sizes = [2, 32], strides = [1, 1]} : vector<2x96xf32> to vector<2x32xf32>
    %138 = vector.extract_strided_slice %133 {offsets = [0, 64], sizes = [2, 32], strides = [1, 1]} : vector<2x96xf32> to vector<2x32xf32>
    %139 = arith.mulf %137, %118 : vector<2x32xf32>
    %140 = arith.mulf %136, %135 : vector<2x32xf32>
    %141 = arith.addf %139, %140 : vector<2x32xf32>
    %142 = math.tanh %141 : vector<2x32xf32>
    %143 = arith.mulf %138, %142 : vector<2x32xf32>
    %144 = vector.extract_strided_slice %143 {offsets = [0, 0], sizes = [1, 32], strides = [1, 1]} : vector<2x32xf32> to vector<1x32xf32>
    %c5 = arith.constant 5 : index
    %c0_32 = arith.constant 0 : index
    %145 = vector.load %arg7[%c5, %c0_32] : memref<16x32xf32, #tpu.memory_space<vmem>>, vector<1x32xf32>
    tpu.vector_store %arg7[%c5, %c0_32], %144 {strides = array<i32>} : memref<16x32xf32, #tpu.memory_space<vmem>>, vector<1x32xf32>,
    %146 = vector.extract_strided_slice %143 {offsets = [1, 0], sizes = [1, 32], strides = [1, 1]} : vector<2x32xf32> to vector<1x32xf32>
    %c13 = arith.constant 13 : index
    %c0_33 = arith.constant 0 : index
    %147 = vector.load %arg7[%c13, %c0_33] : memref<16x32xf32, #tpu.memory_space<vmem>>, vector<1x32xf32>
    tpu.vector_store %arg7[%c13, %c0_33], %146 {strides = array<i32>} : memref<16x32xf32, #tpu.memory_space<vmem>>, vector<1x32xf32>,
    %148 = arith.truncf %143 : vector<2x32xf32> to vector<2x32xbf16>
    %cst_34 = arith.constant dense<0.000000e+00> : vector<2x128xf32>
    %149 = tpu.matmul %148, %7, %cst_34 {dimension_numbers = #tpu.dot_dimension_numbers<[1], [0], [0], [1], [0, 0, 1, 1], [], []>} : vector<2x32xbf16>, vector<32x128xbf16>, vector<2x128xf32> -> vector<2x128xf32>
    %150 = arith.addf %6, %149 : vector<2x128xf32>
    %151 = vector.extract_strided_slice %150 {offsets = [0, 0], sizes = [2, 96], strides = [1, 1]} : vector<2x128xf32> to vector<2x96xf32>
    %152 = arith.negf %151 : vector<2x96xf32>
    %153 = math.exp %152 : vector<2x96xf32>
    %cst_35 = arith.constant 1.000000e+00 : f32
    %154 = vector.broadcast %cst_35 : f32 to vector<2x96xf32>
    %155 = arith.addf %154, %153 : vector<2x96xf32>
    %156 = arith.divf %154, %155 : vector<2x96xf32>
    %157 = vector.extract_strided_slice %150 {offsets = [0, 96], sizes = [2, 32], strides = [1, 1]} : vector<2x128xf32> to vector<2x32xf32>
    %158 = math.tanh %157 : vector<2x32xf32>
    %159 = vector.extract_strided_slice %156 {offsets = [0, 0], sizes = [2, 32], strides = [1, 1]} : vector<2x96xf32> to vector<2x32xf32>
    %160 = vector.extract_strided_slice %156 {offsets = [0, 32], sizes = [2, 32], strides = [1, 1]} : vector<2x96xf32> to vector<2x32xf32>
    %161 = vector.extract_strided_slice %156 {offsets = [0, 64], sizes = [2, 32], strides = [1, 1]} : vector<2x96xf32> to vector<2x32xf32>
    %162 = arith.mulf %160, %141 : vector<2x32xf32>
    %163 = arith.mulf %159, %158 : vector<2x32xf32>
    %164 = arith.addf %162, %163 : vector<2x32xf32>
    %165 = math.tanh %164 : vector<2x32xf32>
    %166 = arith.mulf %161, %165 : vector<2x32xf32>
    %167 = vector.extract_strided_slice %166 {offsets = [0, 0], sizes = [1, 32], strides = [1, 1]} : vector<2x32xf32> to vector<1x32xf32>
    %c6 = arith.constant 6 : index
    %c0_36 = arith.constant 0 : index
    %168 = vector.load %arg7[%c6, %c0_36] : memref<16x32xf32, #tpu.memory_space<vmem>>, vector<1x32xf32>
    tpu.vector_store %arg7[%c6, %c0_36], %167 {strides = array<i32>} : memref<16x32xf32, #tpu.memory_space<vmem>>, vector<1x32xf32>,
    %169 = vector.extract_strided_slice %166 {offsets = [1, 0], sizes = [1, 32], strides = [1, 1]} : vector<2x32xf32> to vector<1x32xf32>
    %c14 = arith.constant 14 : index
    %c0_37 = arith.constant 0 : index
    %170 = vector.load %arg7[%c14, %c0_37] : memref<16x32xf32, #tpu.memory_space<vmem>>, vector<1x32xf32>
    tpu.vector_store %arg7[%c14, %c0_37], %169 {strides = array<i32>} : memref<16x32xf32, #tpu.memory_space<vmem>>, vector<1x32xf32>,
    %171 = arith.truncf %166 : vector<2x32xf32> to vector<2x32xbf16>
    %cst_38 = arith.constant dense<0.000000e+00> : vector<2x128xf32>
    %172 = tpu.matmul %171, %7, %cst_38 {dimension_numbers = #tpu.dot_dimension_numbers<[1], [0], [0], [1], [0, 0, 1, 1], [], []>} : vector<2x32xbf16>, vector<32x128xbf16>, vector<2x128xf32> -> vector<2x128xf32>
    %173 = arith.addf %6, %172 : vector<2x128xf32>
    %174 = vector.extract_strided_slice %173 {offsets = [0, 0], sizes = [2, 96], strides = [1, 1]} : vector<2x128xf32> to vector<2x96xf32>
    %175 = arith.negf %174 : vector<2x96xf32>
    %176 = math.exp %175 : vector<2x96xf32>
    %cst_39 = arith.constant 1.000000e+00 : f32
    %177 = vector.broadcast %cst_39 : f32 to vector<2x96xf32>
    %178 = arith.addf %177, %176 : vector<2x96xf32>
    %179 = arith.divf %177, %178 : vector<2x96xf32>
    %180 = vector.extract_strided_slice %173 {offsets = [0, 96], sizes = [2, 32], strides = [1, 1]} : vector<2x128xf32> to vector<2x32xf32>
    %181 = math.tanh %180 : vector<2x32xf32>
    %182 = vector.extract_strided_slice %179 {offsets = [0, 0], sizes = [2, 32], strides = [1, 1]} : vector<2x96xf32> to vector<2x32xf32>
    %183 = vector.extract_strided_slice %179 {offsets = [0, 32], sizes = [2, 32], strides = [1, 1]} : vector<2x96xf32> to vector<2x32xf32>
    %184 = vector.extract_strided_slice %179 {offsets = [0, 64], sizes = [2, 32], strides = [1, 1]} : vector<2x96xf32> to vector<2x32xf32>
    %185 = arith.mulf %183, %164 : vector<2x32xf32>
    %186 = arith.mulf %182, %181 : vector<2x32xf32>
    %187 = arith.addf %185, %186 : vector<2x32xf32>
    %188 = math.tanh %187 : vector<2x32xf32>
    %189 = arith.mulf %184, %188 : vector<2x32xf32>
    %190 = vector.extract_strided_slice %189 {offsets = [0, 0], sizes = [1, 32], strides = [1, 1]} : vector<2x32xf32> to vector<1x32xf32>
    %c7 = arith.constant 7 : index
    %c0_40 = arith.constant 0 : index
    %191 = vector.load %arg7[%c7, %c0_40] : memref<16x32xf32, #tpu.memory_space<vmem>>, vector<1x32xf32>
    tpu.vector_store %arg7[%c7, %c0_40], %190 {strides = array<i32>} : memref<16x32xf32, #tpu.memory_space<vmem>>, vector<1x32xf32>,
    %192 = vector.extract_strided_slice %189 {offsets = [1, 0], sizes = [1, 32], strides = [1, 1]} : vector<2x32xf32> to vector<1x32xf32>
    %c15 = arith.constant 15 : index
    %c0_41 = arith.constant 0 : index
    %193 = vector.load %arg7[%c15, %c0_41] : memref<16x32xf32, #tpu.memory_space<vmem>>, vector<1x32xf32>
    tpu.vector_store %arg7[%c15, %c0_41], %192 {strides = array<i32>} : memref<16x32xf32, #tpu.memory_space<vmem>>, vector<1x32xf32>,
    %c0_42 = arith.constant 0 : index
    %c0_43 = arith.constant 0 : index
    %194 = vector.load %arg7[%c0_42, %c0_43] : memref<16x32xf32, #tpu.memory_space<vmem>>, vector<16x32xf32>
    %195 = arith.truncf %194 : vector<16x32xf32> to vector<16x32xbf16>
    %c0_44 = arith.constant 0 : index
    %c0_45 = arith.constant 0 : index
    %196 = vector.load %arg4[%c0_44, %c0_45] : memref<32x128xbf16, #tpu.memory_space<vmem>>, vector<32x128xbf16>
    %cst_46 = arith.constant dense<0.000000e+00> : vector<16x128xf32>
    %197 = tpu.matmul %195, %196, %cst_46 {dimension_numbers = #tpu.dot_dimension_numbers<[1], [0], [0], [1], [0, 0, 1, 1], [], []>} : vector<16x32xbf16>, vector<32x128xbf16>, vector<16x128xf32> -> vector<16x128xf32>
    %c0_47 = arith.constant 0 : index
    %c0_48 = arith.constant 0 : index
    %198 = vector.load %arg5[%c0_47, %c0_48] : memref<1x128xf32, #tpu.memory_space<vmem>>, vector<1x128xf32>
    %199 = vector.broadcast %198 : vector<1x128xf32> to vector<16x128xf32>
    %200 = arith.addf %197, %199 : vector<16x128xf32>
    %c0_49 = arith.constant 0 : index
    %c0_50 = arith.constant 0 : index
    %201 = vector.load %arg6[%c0_49, %c0_50] : memref<16x128xf32, #tpu.memory_space<vmem>>, vector<16x128xf32>
    tpu.vector_store %arg6[%c0_49, %c0_50], %200 {strides = array<i32>} : memref<16x128xf32, #tpu.memory_space<vmem>>, vector<16x128xf32>,
    return
  }
}

</mosaic_0001>

<llo_original>
// kernel: lstm_decoder_forward.1
$region0: #{lstm_decoder_forward.1}
  #allocation0 [shape = 'u32[]', space=smem, size = 0x4, offset = 0x4, fixed_abs, tag = 'smem constant byte address 0x4 - core index']
  #allocation1 [shape = 'u32[144,128]{1,0:T(1,128)}', space=vmem, size = 0x12000, scoped, tag = 'internal scratch']
  #allocation2 [shape = 'f32[16,32]{1,0:T(8,128)}', space=vmem, size = 0x2000, scoped, tag = 'scratch operand']
  %s0 = inlined_call_operand.hbm [shape: f32[2,32], index: 0, kind: input, shape index: {}]
  %s1 = inlined_call_operand.hbm [shape: bf16[32,128], index: 1, kind: input, shape index: {}]
  %s2 = inlined_call_operand.hbm [shape: bf16[32,128], index: 2, kind: input, shape index: {}]
  %s3 = inlined_call_operand.vmem [shape: f32[1,128], index: 3, kind: input, shape index: {}]
  %s4 = inlined_call_operand.hbm [shape: bf16[32,128], index: 4, kind: input, shape index: {}]
  %s5 = inlined_call_operand.vmem [shape: f32[1,128], index: 5, kind: input, shape index: {}]
  %s6 = inlined_call_operand.hbm [shape: f32[16,128], index: 6, kind: output, shape index: {}]
  %s7 = sld [smem:[#allocation0]]
  $region50: #{lstm_decoder_forward.1} parent=0
    _
  %s9 = ssub.s32 1, %s7
  %s10 = scalar_select 0, %s9, %s7
  $region1: #{lstm_decoder_forward.1} parent=0
    #allocation3 [shape = 'u8[1024]{0}', space=vmem, size = 0x400, scoped, tag = 'input window, operand 0, single buffered']
    #allocation4 [shape = 's32[1]{0}', space=sflag, size = 0x4, scoped, tag = 'scoped memory for lstm_decoder_forward.1']
    #allocation5 [shape = 's32[1]{0}', space=sflag, size = 0x4, scoped, tag = 'scoped memory for lstm_decoder_forward.1']
    #allocation6 [shape = 'u8[8192]{0}', space=vmem, size = 0x2000, scoped, tag = 'input window, operand 1, single buffered']
    #allocation7 [shape = 's32[1]{0}', space=sflag, size = 0x4, scoped, tag = 'scoped memory for lstm_decoder_forward.1']
    #allocation8 [shape = 'u8[8192]{0}', space=vmem, size = 0x2000, scoped, tag = 'input window, operand 2, single buffered']
    #allocation9 [shape = 'u8[8192]{0}', space=vmem, size = 0x2000, scoped, tag = 'input window, operand 4, single buffered']
    #allocation10 [shape = 's32[1]{0}', space=sflag, size = 0x4, scoped, tag = 'scoped memory for lstm_decoder_forward.1']
    #allocation11 [shape = 'u8[8192]{0}', space=vmem, size = 0x2000, scoped, tag = 'output window, operand 0, single buffered']
    %11 = vsyncpa [#allocation4], 0
    %12 = vsyncpa [#allocation7], 0
    %13 = vsyncpa [#allocation10], 0
    %14 = vsyncpa [#allocation5], 0
    // Predicated region
    $region2: #{lstm_decoder_forward.1} parent=1 // pred_check
      _
    $region3: #{lstm_decoder_forward.1} parent=1 // pred_check_branch
      %16 = sbr.rel (0) target = $region5
    $region4: #{lstm_decoder_forward.1} parent=1 // pred_region
      %s18 = ssub.s32 32, 32
      %19 = vsyncadd [#allocation4], %s18
      %s21 = sshll.u32 [#allocation3], 4
      %s22 = int_to_ptr.vmem [resolvable:$true] %s21
      %24 = dma.hbm_to_vmem [thread:$0]  %s0, 32, %s22, [#allocation4]
    $region5: #{lstm_decoder_forward.1} parent=1 // pred_fallthru
      _
    // Predicated region
    $region6: #{lstm_decoder_forward.1} parent=1 // pred_check
      _
    $region7: #{lstm_decoder_forward.1} parent=1 // pred_check_branch
      %26 = sbr.rel (0) target = $region9
    $region8: #{lstm_decoder_forward.1} parent=1 // pred_region
      %s28 = ssub.s32 256, 256
      %29 = vsyncadd [#allocation7], %s28
      %s30 = sshll.u32 [#allocation6], 4
      %s31 = int_to_ptr.vmem [resolvable:$true] %s30
      %36 = dma.hbm_to_vmem [thread:$0]  %s1, 256, %s31, [#allocation7], 64, 64, 4
    $region9: #{lstm_decoder_forward.1} parent=1 // pred_fallthru
      _
    // Predicated region
    $region10: #{lstm_decoder_forward.1} parent=1 // pred_check
      _
    $region11: #{lstm_decoder_forward.1} parent=1 // pred_check_branch
      %38 = sbr.rel (0) target = $region13
    $region12: #{lstm_decoder_forward.1} parent=1 // pred_region
      %s40 = ssub.s32 256, 256
      %41 = vsyncadd [#allocation7], %s40
      %s42 = sshll.u32 [#allocation8], 4
      %s43 = int_to_ptr.vmem [resolvable:$true] %s42
      %48 = dma.hbm_to_vmem [thread:$0]  %s2, 256, %s43, [#allocation7], 64, 64, 4
    $region13: #{lstm_decoder_forward.1} parent=1 // pred_fallthru
      _
    // Predicated region
    $region14: #{lstm_decoder_forward.1} parent=1 // pred_check
      _
    $region15: #{lstm_decoder_forward.1} parent=1 // pred_check_branch
      %50 = sbr.rel (0) target = $region17
    $region16: #{lstm_decoder_forward.1} parent=1 // pred_region
      _
    $region17: #{lstm_decoder_forward.1} parent=1 // pred_fallthru
      _
    // Predicated region
    $region18: #{lstm_decoder_forward.1} parent=1 // pred_check
      _
    $region19: #{lstm_decoder_forward.1} parent=1 // pred_check_branch
      %52 = sbr.rel (0) target = $region21
    $region20: #{lstm_decoder_forward.1} parent=1 // pred_region
      %s54 = ssub.s32 256, 256
      %55 = vsyncadd [#allocation10], %s54
      %s56 = sshll.u32 [#allocation9], 4
      %s57 = int_to_ptr.vmem [resolvable:$true] %s56
      %62 = dma.hbm_to_vmem [thread:$0]  %s4, 256, %s57, [#allocation10], 64, 64, 4
    $region21: #{lstm_decoder_forward.1} parent=1 // pred_fallthru
      _
    // Predicated region
    $region22: #{lstm_decoder_forward.1} parent=1 // pred_check
      _
    $region23: #{lstm_decoder_forward.1} parent=1 // pred_check_branch
      %64 = sbr.rel (0) target = $region25
    $region24: #{lstm_decoder_forward.1} parent=1 // pred_region
      _
    $region25: #{lstm_decoder_forward.1} parent=1 // pred_fallthru
      _
    // Predicated region
    $region26: #{lstm_decoder_forward.1} parent=1 // pred_check
      _
    $region27: #{lstm_decoder_forward.1} parent=1 // pred_check_branch
      %66 = sbr.rel (0) target = $region29
    $region28: #{lstm_decoder_forward.1} parent=1 // pred_region
      %67 = dma.done [#allocation4], 32
    $region29: #{lstm_decoder_forward.1} parent=1 // pred_fallthru
      _
    // Predicated region
    $region30: #{lstm_decoder_forward.1} parent=1 // pred_check
      _
    $region31: #{lstm_decoder_forward.1} parent=1 // pred_check_branch
      %69 = sbr.rel (0) target = $region33
    $region32: #{lstm_decoder_forward.1} parent=1 // pred_region
      %70 = dma.done [#allocation7], 256
    $region33: #{lstm_decoder_forward.1} parent=1 // pred_fallthru
      _
    // Predicated region
    $region34: #{lstm_decoder_forward.1} parent=1 // pred_check
      _
    $region35: #{lstm_decoder_forward.1} parent=1 // pred_check_branch
      %72 = sbr.rel (0) target = $region37
    $region36: #{lstm_decoder_forward.1} parent=1 // pred_region
      %73 = dma.done [#allocation7], 256
    $region37: #{lstm_decoder_forward.1} parent=1 // pred_fallthru
      _
    // Predicated region
    $region38: #{lstm_decoder_forward.1} parent=1 // pred_check
      _
    $region39: #{lstm_decoder_forward.1} parent=1 // pred_check_branch
      %75 = sbr.rel (0) target = $region41
    $region40: #{lstm_decoder_forward.1} parent=1 // pred_region
      %76 = dma.done [#allocation10], 256
    $region41: #{lstm_decoder_forward.1} parent=1 // pred_fallthru
      _
    %v78 = vld [vmem:[#allocation3] sm:$0x3]
    %v79 = vpack.c.bf16 %v78, %v78
    %v80 = vld [vmem:[#allocation6] sm:$0xf]
    %v81 = vld [vmem:[#allocation6 + $0x4] sm:$0xf]
    %v82 = vld [vmem:[#allocation6 + $0x8] sm:$0xf]
    %v83 = vld [vmem:[#allocation6 + $0xc] sm:$0xf]
    %v84 = vld [vmem:[%s3] sm:$0x1]
    %v86 = vlaneseq
    %v87 = vshrl.u32 %v86, 7
    %v88 = vsub.s32 0, %v87
    %v89 = vrot.slane %v84, %v88
    %v95 = vunpack.c.l.b16 %v80
    %v96 = vunpack.c.l.b16 %v81
    %v97 = vunpack.c.l.b16 %v82
    %v98 = vunpack.c.l.b16 %v83
    %v99 = vpack.c.b16 %v96, %v95
    %v100 = vpack.c.b16 %v98, %v97
    %vm103 = vcmask 261120
    %v105 = vsel %vm103, %v79, 0
    %107 = vmatprep.subr.bf16.mxu0 0
    %108 = vmatpush1.bf16.msra.mxu0 0
    %109 = vmatprep.subr.bf16.mxu0 0
    %110 = vmatpush1.bf16.msra.mxu0 0
    %111 = vmatprep.subr.bf16.mxu0 0
    %112 = vmatpush1.bf16.msra.mxu0 0
    %113 = vmatprep.subr.bf16.mxu0 0
    %114 = vmatpush1.bf16.msra.mxu0 0
    %115 = vmatprep.subr.bf16.mxu0 0
    %116 = vmatpush1.bf16.msra.mxu0 0
    %117 = vmatprep.subr.bf16.mxu0 0
    %118 = vmatpush1.bf16.msra.mxu0 0
    %119 = vmatprep.subr.bf16.mxu0 0
    %120 = vmatpush1.bf16.msra.mxu0 %v100
    %121 = vmatprep.subr.bf16.mxu0 0
    %122 = vmatpush1.bf16.msra.mxu0 %v99
    %123 = vmatprep.subr.bf16.mxu0 0
    %124 = vmatpush2.bf16.msra.mxu0 0
    %125 = vmatprep.subr.bf16.mxu0 0
    %126 = vmatpush2.bf16.msra.mxu0 0
    %127 = vmatprep.subr.bf16.mxu0 0
    %128 = vmatpush2.bf16.msra.mxu0 0
    %129 = vmatprep.subr.bf16.mxu0 0
    %130 = vmatpush2.bf16.msra.mxu0 0
    %131 = vmatprep.subr.bf16.mxu0 0
    %132 = vmatpush2.bf16.msra.mxu0 0
    %133 = vmatprep.subr.bf16.mxu0 0
    %134 = vmatpush2.bf16.msra.mxu0 0
    %135 = vmatprep.subr.bf16.mxu0 0
    %136 = vmatpush2.bf16.msra.mxu0 0
    %137 = vmatprep.subr.bf16.mxu0 0
    %138 = vmatpush2.bf16.msra.mxu0 0
    %139 = vmatprep.mubr.bf16.mxu0 0
    %140 = vmatmul.mubr.bf16.gmra.mxu0 %v105
    %v141 = vpop.f32.mrf.mxu0
    %v142 = vadd.f32 %v89, %v141
    %v143 = vpop.f32.mrf.mxu0
    %v144 = vpop.f32.mrf.mxu0
    %v145 = vpop.f32.mrf.mxu0
    %146 = vdwg.mxu0
    %v147 = vld [vmem:[#allocation8] sm:$0xf]
    %v148 = vld [vmem:[#allocation8 + $0x4] sm:$0xf]
    %v149 = vld [vmem:[#allocation8 + $0x8] sm:$0xf]
    %v150 = vld [vmem:[#allocation8 + $0xc] sm:$0xf]
    %v155 = vunpack.c.l.b16 %v147
    %v156 = vunpack.c.l.b16 %v148
    %v157 = vunpack.c.l.b16 %v149
    %v158 = vunpack.c.l.b16 %v150
    %v159 = vpack.c.b16 %v156, %v155
    %v160 = vpack.c.b16 %v158, %v157
    %v164 = vsel %vm103, 0, 0
    %166 = vmatprep.subr.bf16.mxu0 0
    %167 = vmatpush1.bf16.msra.mxu0 0
    %168 = vmatprep.subr.bf16.mxu0 0
    %169 = vmatpush1.bf16.msra.mxu0 0
    %170 = vmatprep.subr.bf16.mxu0 0
    %171 = vmatpush1.bf16.msra.mxu0 0
    %172 = vmatprep.subr.bf16.mxu0 0
    %173 = vmatpush1.bf16.msra.mxu0 0
    %174 = vmatprep.subr.bf16.mxu0 0
    %175 = vmatpush1.bf16.msra.mxu0 0
    %176 = vmatprep.subr.bf16.mxu0 0
    %177 = vmatpush1.bf16.msra.mxu0 0
    %178 = vmatprep.subr.bf16.mxu0 0
    %179 = vmatpush1.bf16.msra.mxu0 %v160
    %180 = vmatprep.subr.bf16.mxu0 0
    %181 = vmatpush1.bf16.msra.mxu0 %v159
    %182 = vmatprep.subr.bf16.mxu0 0
    %183 = vmatpush2.bf16.msra.mxu0 0
    %184 = vmatprep.subr.bf16.mxu0 0
    %185 = vmatpush2.bf16.msra.mxu0 0
    %186 = vmatprep.subr.bf16.mxu0 0
    %187 = vmatpush2.bf16.msra.mxu0 0
    %188 = vmatprep.subr.bf16.mxu0 0
    %189 = vmatpush2.bf16.msra.mxu0 0
    %190 = vmatprep.subr.bf16.mxu0 0
    %191 = vmatpush2.bf16.msra.mxu0 0
    %192 = vmatprep.subr.bf16.mxu0 0
    %193 = vmatpush2.bf16.msra.mxu0 0
    %194 = vmatprep.subr.bf16.mxu0 0
    %195 = vmatpush2.bf16.msra.mxu0 0
    %196 = vmatprep.subr.bf16.mxu0 0
    %197 = vmatpush2.bf16.msra.mxu0 0
    %198 = vmatprep.mubr.bf16.mxu0 0
    %199 = vmatmul.mubr.bf16.gmra.mxu0 %v164
    %v200 = vpop.f32.mrf.mxu0
    %v201 = vadd.f32 0.0, %v200
    %v202 = vpop.f32.mrf.mxu0
    %v203 = vpop.f32.mrf.mxu0
    %v204 = vpop.f32.mrf.mxu0
    %205 = vdwg.mxu0
    %v206 = vadd.f32 %v142, %v201
    %v207 = vxor.u32 %v206, 2147483648
    %v208 = vmul.f32 %v207, 1.442695
    %v209 = vpow.pop %v208
    %v210 = vadd.f32 %v209, 1.0
    %v211 = vrcp.pop %v210
    %v212 = vmul.f32 1.0, %v211
    %v213 = vtanh.pop %v206
    %v214 = vmul.f32 %v212, 0.0
    %216 = vrot.lane.b32.xlu0 %v213, 32
    %v217 = vpop.permute.xlu0 %216
    %v219 = vmul.f32 %v212, %v217
    %221 = vrot.lane.b32.xlu0 %v219, 32
    %v222 = vpop.permute.xlu0 %221
    %v224 = vadd.f32 %v214, %v222
    %v225 = vtanh.pop %v224
    %227 = vrot.lane.b32.xlu0 %v225, 32
    %v228 = vpop.permute.xlu0 %227
    %v230 = vmul.f32 %v212, %v228
    %232 = vrot.lane.b32.xlu0 %v230, 64
    %v233 = vpop.permute.xlu0 %232
    %vm235 = vcmask 253952
    %236 = vst.msk [vmem:[#allocation2] sm:$0x1] %vm235, %v233
    %vm237 = vcmask 254977
    %238 = vst.msk [vmem:[#allocation2 + $0x7] sm:$0x2] %vm237, %v233
    %v239 = vpack.c.bf16 %v230, %v230
    %241 = vrot.lane.b32.xlu0 %v239, 64
    %v242 = vpop.permute.xlu0 %241
    %v244 = vsel %vm103, %v242, 0
    %246 = vmatprep.subr.bf16.mxu0 0
    %247 = vmatpush1.bf16.msra.mxu0 0
    %248 = vmatprep.subr.bf16.mxu0 0
    %249 = vmatpush1.bf16.msra.mxu0 0
    %250 = vmatprep.subr.bf16.mxu0 0
    %251 = vmatpush1.bf16.msra.mxu0 0
    %252 = vmatprep.subr.bf16.mxu0 0
    %253 = vmatpush1.bf16.msra.mxu0 0
    %254 = vmatprep.subr.bf16.mxu0 0
    %255 = vmatpush1.bf16.msra.mxu0 0
    %256 = vmatprep.subr.bf16.mxu0 0
    %257 = vmatpush1.bf16.msra.mxu0 0
    %258 = vmatprep.subr.bf16.mxu0 0
    %259 = vmatpush1.bf16.msra.mxu0 %v160
    %260 = vmatprep.subr.bf16.mxu0 0
    %261 = vmatpush1.bf16.msra.mxu0 %v159
    %262 = vmatprep.subr.bf16.mxu0 0
    %263 = vmatpush2.bf16.msra.mxu0 0
    %264 = vmatprep.subr.bf16.mxu0 0
    %265 = vmatpush2.bf16.msra.mxu0 0
    %266 = vmatprep.subr.bf16.mxu0 0
    %267 = vmatpush2.bf16.msra.mxu0 0
    %268 = vmatprep.subr.bf16.mxu0 0
    %269 = vmatpush2.bf16.msra.mxu0 0
    %270 = vmatprep.subr.bf16.mxu0 0
    %271 = vmatpush2.bf16.msra.mxu0 0
    %272 = vmatprep.subr.bf16.mxu0 0
    %273 = vmatpush2.bf16.msra.mxu0 0
    %274 = vmatprep.subr.bf16.mxu0 0
    %275 = vmatpush2.bf16.msra.mxu0 0
    %276 = vmatprep.subr.bf16.mxu0 0
    %277 = vmatpush2.bf16.msra.mxu0 0
    %278 = vmatprep.mubr.bf16.mxu0 0
    %279 = vmatmul.mubr.bf16.gmra.mxu0 %v244
    %v280 = vpop.f32.mrf.mxu0
    %v281 = vadd.f32 0.0, %v280
    %v282 = vpop.f32.mrf.mxu0
    %v283 = vpop.f32.mrf.mxu0
    %v284 = vpop.f32.mrf.mxu0
    %285 = vdwg.mxu0
    %v286 = vadd.f32 %v142, %v281
    %v287 = vxor.u32 %v286, 2147483648
    %v288 = vmul.f32 %v287, 1.442695
    %v289 = vpow.pop %v288
    %v290 = vadd.f32 %v289, 1.0
    %v291 = vrcp.pop %v290
    %v292 = vmul.f32 1.0, %v291
    %v293 = vtanh.pop %v286
    %v294 = vmul.f32 %v292, %v224
    %296 = vrot.lane.b32.xlu0 %v293, 32
    %v297 = vpop.permute.xlu0 %296
    %v299 = vmul.f32 %v292, %v297
    %301 = vrot.lane.b32.xlu0 %v299, 32
    %v302 = vpop.permute.xlu0 %301
    %v304 = vadd.f32 %v294, %v302
    %v305 = vtanh.pop %v304
    %307 = vrot.lane.b32.xlu0 %v305, 32
    %v308 = vpop.permute.xlu0 %307
    %v310 = vmul.f32 %v292, %v308
    %312 = vrot.lane.b32.xlu0 %v310, 64
    %v313 = vpop.permute.xlu0 %312
    %315 = vst.msk [vmem:[#allocation2 + $0x1] sm:$0x1] %vm235, %v313
    %316 = vst.msk [vmem:[#allocation2 + $0x8] sm:$0x2] %vm237, %v313
    %v317 = vpack.c.bf16 %v310, %v310
    %319 = vrot.lane.b32.xlu0 %v317, 64
    %v320 = vpop.permute.xlu0 %319
    %v322 = vsel %vm103, %v320, 0
    %324 = vmatprep.subr.bf16.mxu0 0
    %325 = vmatpush1.bf16.msra.mxu0 0
    %326 = vmatprep.subr.bf16.mxu0 0
    %327 = vmatpush1.bf16.msra.mxu0 0
    %328 = vmatprep.subr.bf16.mxu0 0
    %329 = vmatpush1.bf16.msra.mxu0 0
    %330 = vmatprep.subr.bf16.mxu0 0
    %331 = vmatpush1.bf16.msra.mxu0 0
    %332 = vmatprep.subr.bf16.mxu0 0
    %333 = vmatpush1.bf16.msra.mxu0 0
    %334 = vmatprep.subr.bf16.mxu0 0
    %335 = vmatpush1.bf16.msra.mxu0 0
    %336 = vmatprep.subr.bf16.mxu0 0
    %337 = vmatpush1.bf16.msra.mxu0 %v160
    %338 = vmatprep.subr.bf16.mxu0 0
    %339 = vmatpush1.bf16.msra.mxu0 %v159
    %340 = vmatprep.subr.bf16.mxu0 0
    %341 = vmatpush2.bf16.msra.mxu0 0
    %342 = vmatprep.subr.bf16.mxu0 0
    %343 = vmatpush2.bf16.msra.mxu0 0
    %344 = vmatprep.subr.bf16.mxu0 0
    %345 = vmatpush2.bf16.msra.mxu0 0
    %346 = vmatprep.subr.bf16.mxu0 0
    %347 = vmatpush2.bf16.msra.mxu0 0
    %348 = vmatprep.subr.bf16.mxu0 0
    %349 = vmatpush2.bf16.msra.mxu0 0
    %350 = vmatprep.subr.bf16.mxu0 0
    %351 = vmatpush2.bf16.msra.mxu0 0
    %352 = vmatprep.subr.bf16.mxu0 0
    %353 = vmatpush2.bf16.msra.mxu0 0
    %354 = vmatprep.subr.bf16.mxu0 0
    %355 = vmatpush2.bf16.msra.mxu0 0
    %356 = vmatprep.mubr.bf16.mxu0 0
    %357 = vmatmul.mubr.bf16.gmra.mxu0 %v322
    %v358 = vpop.f32.mrf.mxu0
    %v359 = vadd.f32 0.0, %v358
    %v360 = vpop.f32.mrf.mxu0
    %v361 = vpop.f32.mrf.mxu0
    %v362 = vpop.f32.mrf.mxu0
    %363 = vdwg.mxu0
    %v364 = vadd.f32 %v142, %v359
    %v365 = vxor.u32 %v364, 2147483648
    %v366 = vmul.f32 %v365, 1.442695
    %v367 = vpow.pop %v366
    %v368 = vadd.f32 %v367, 1.0
    %v369 = vrcp.pop %v368
    %v370 = vmul.f32 1.0, %v369
    %v371 = vtanh.pop %v364
    %v372 = vmul.f32 %v370, %v304
    %374 = vrot.lane.b32.xlu0 %v371, 32
    %v375 = vpop.permute.xlu0 %374
    %v377 = vmul.f32 %v370, %v375
    %379 = vrot.lane.b32.xlu0 %v377, 32
    %v380 = vpop.permute.xlu0 %379
    %v382 = vadd.f32 %v372, %v380
    %v383 = vtanh.pop %v382
    %385 = vrot.lane.b32.xlu0 %v383, 32
    %v386 = vpop.permute.xlu0 %385
    %v388 = vmul.f32 %v370, %v386
    %390 = vrot.lane.b32.xlu0 %v388, 64
    %v391 = vpop.permute.xlu0 %390
    %393 = vst.msk [vmem:[#allocation2 + $0x2] sm:$0x1] %vm235, %v391
    %394 = vst.msk [vmem:[#allocation2 + $0x9] sm:$0x2] %vm237, %v391
    %v395 = vpack.c.bf16 %v388, %v388
    %397 = vrot.lane.b32.xlu0 %v395, 64
    %v398 = vpop.permute.xlu0 %397
    %v400 = vsel %vm103, %v398, 0
    %402 = vmatprep.subr.bf16.mxu0 0
    %403 = vmatpush1.bf16.msra.mxu0 0
    %404 = vmatprep.subr.bf16.mxu0 0
    %405 = vmatpush1.bf16.msra.mxu0 0
    %406 = vmatprep.subr.bf16.mxu0 0
    %407 = vmatpush1.bf16.msra.mxu0 0
    %408 = vmatprep.subr.bf16.mxu0 0
    %409 = vmatpush1.bf16.msra.mxu0 0
    %410 = vmatprep.subr.bf16.mxu0 0
    %411 = vmatpush1.bf16.msra.mxu0 0
    %412 = vmatprep.subr.bf16.mxu0 0
    %413 = vmatpush1.bf16.msra.mxu0 0
    %414 = vmatprep.subr.bf16.mxu0 0
    %415 = vmatpush1.bf16.msra.mxu0 %v160
    %416 = vmatprep.subr.bf16.mxu0 0
    %417 = vmatpush1.bf16.msra.mxu0 %v159
    %418 = vmatprep.subr.bf16.mxu0 0
    %419 = vmatpush2.bf16.msra.mxu0 0
    %420 = vmatprep.subr.bf16.mxu0 0
    %421 = vmatpush2.bf16.msra.mxu0 0
    %422 = vmatprep.subr.bf16.mxu0 0
    %423 = vmatpush2.bf16.msra.mxu0 0
    %424 = vmatprep.subr.bf16.mxu0 0
    %425 = vmatpush2.bf16.msra.mxu0 0
    %426 = vmatprep.subr.bf16.mxu0 0
    %427 = vmatpush2.bf16.msra.mxu0 0
    %428 = vmatprep.subr.bf16.mxu0 0
    %429 = vmatpush2.bf16.msra.mxu0 0
    %430 = vmatprep.subr.bf16.mxu0 0
    %431 = vmatpush2.bf16.msra.mxu0 0
    %432 = vmatprep.subr.bf16.mxu0 0
    %433 = vmatpush2.bf16.msra.mxu0 0
    %434 = vmatprep.mubr.bf16.mxu0 0
    %435 = vmatmul.mubr.bf16.gmra.mxu0 %v400
    %v436 = vpop.f32.mrf.mxu0
    %v437 = vadd.f32 0.0, %v436
    %v438 = vpop.f32.mrf.mxu0
    %v439 = vpop.f32.mrf.mxu0
    %v440 = vpop.f32.mrf.mxu0
    %441 = vdwg.mxu0
    %v442 = vadd.f32 %v142, %v437
    %v443 = vxor.u32 %v442, 2147483648
    %v444 = vmul.f32 %v443, 1.442695
    %v445 = vpow.pop %v444
    %v446 = vadd.f32 %v445, 1.0
    %v447 = vrcp.pop %v446
    %v448 = vmul.f32 1.0, %v447
    %v449 = vtanh.pop %v442
    %v450 = vmul.f32 %v448, %v382
    %452 = vrot.lane.b32.xlu0 %v449, 32
    %v453 = vpop.permute.xlu0 %452
    %v455 = vmul.f32 %v448, %v453
    %457 = vrot.lane.b32.xlu0 %v455, 32
    %v458 = vpop.permute.xlu0 %457
    %v460 = vadd.f32 %v450, %v458
    %v461 = vtanh.pop %v460
    %463 = vrot.lane.b32.xlu0 %v461, 32
    %v464 = vpop.permute.xlu0 %463
    %v466 = vmul.f32 %v448, %v464
    %468 = vrot.lane.b32.xlu0 %v466, 64
    %v469 = vpop.permute.xlu0 %468
    %471 = vst.msk [vmem:[#allocation2 + $0x3] sm:$0x1] %vm235, %v469
    %472 = vst.msk [vmem:[#allocation2 + $0xa] sm:$0x2] %vm237, %v469
    %v473 = vpack.c.bf16 %v466, %v466
    %475 = vrot.lane.b32.xlu0 %v473, 64
    %v476 = vpop.permute.xlu0 %475
    %v478 = vsel %vm103, %v476, 0
    %480 = vmatprep.subr.bf16.mxu0 0
    %481 = vmatpush1.bf16.msra.mxu0 0
    %482 = vmatprep.subr.bf16.mxu0 0
    %483 = vmatpush1.bf16.msra.mxu0 0
    %484 = vmatprep.subr.bf16.mxu0 0
    %485 = vmatpush1.bf16.msra.mxu0 0
    %486 = vmatprep.subr.bf16.mxu0 0
    %487 = vmatpush1.bf16.msra.mxu0 0
    %488 = vmatprep.subr.bf16.mxu0 0
    %489 = vmatpush1.bf16.msra.mxu0 0
    %490 = vmatprep.subr.bf16.mxu0 0
    %491 = vmatpush1.bf16.msra.mxu0 0
    %492 = vmatprep.subr.bf16.mxu0 0
    %493 = vmatpush1.bf16.msra.mxu0 %v160
    %494 = vmatprep.subr.bf16.mxu0 0
    %495 = vmatpush1.bf16.msra.mxu0 %v159
    %496 = vmatprep.subr.bf16.mxu0 0
    %497 = vmatpush2.bf16.msra.mxu0 0
    %498 = vmatprep.subr.bf16.mxu0 0
    %499 = vmatpush2.bf16.msra.mxu0 0
    %500 = vmatprep.subr.bf16.mxu0 0
    %501 = vmatpush2.bf16.msra.mxu0 0
    %502 = vmatprep.subr.bf16.mxu0 0
    %503 = vmatpush2.bf16.msra.mxu0 0
    %504 = vmatprep.subr.bf16.mxu0 0
    %505 = vmatpush2.bf16.msra.mxu0 0
    %506 = vmatprep.subr.bf16.mxu0 0
    %507 = vmatpush2.bf16.msra.mxu0 0
    %508 = vmatprep.subr.bf16.mxu0 0
    %509 = vmatpush2.bf16.msra.mxu0 0
    %510 = vmatprep.subr.bf16.mxu0 0
    %511 = vmatpush2.bf16.msra.mxu0 0
    %512 = vmatprep.mubr.bf16.mxu0 0
    %513 = vmatmul.mubr.bf16.gmra.mxu0 %v478
    %v514 = vpop.f32.mrf.mxu0
    %v515 = vadd.f32 0.0, %v514
    %v516 = vpop.f32.mrf.mxu0
    %v517 = vpop.f32.mrf.mxu0
    %v518 = vpop.f32.mrf.mxu0
    %519 = vdwg.mxu0
    %v520 = vadd.f32 %v142, %v515
    %v521 = vxor.u32 %v520, 2147483648
    %v522 = vmul.f32 %v521, 1.442695
    %v523 = vpow.pop %v522
    %v524 = vadd.f32 %v523, 1.0
    %v525 = vrcp.pop %v524
    %v526 = vmul.f32 1.0, %v525
    %v527 = vtanh.pop %v520
    %v528 = vmul.f32 %v526, %v460
    %530 = vrot.lane.b32.xlu0 %v527, 32
    %v531 = vpop.permute.xlu0 %530
    %v533 = vmul.f32 %v526, %v531
    %535 = vrot.lane.b32.xlu0 %v533, 32
    %v536 = vpop.permute.xlu0 %535
    %v538 = vadd.f32 %v528, %v536
    %v539 = vtanh.pop %v538
    %541 = vrot.lane.b32.xlu0 %v539, 32
    %v542 = vpop.permute.xlu0 %541
    %v544 = vmul.f32 %v526, %v542
    %546 = vrot.lane.b32.xlu0 %v544, 64
    %v547 = vpop.permute.xlu0 %546
    %549 = vst.msk [vmem:[#allocation2 + $0x4] sm:$0x1] %vm235, %v547
    %550 = vst.msk [vmem:[#allocation2 + $0xb] sm:$0x2] %vm237, %v547
    %v551 = vpack.c.bf16 %v544, %v544
    %553 = vrot.lane.b32.xlu0 %v551, 64
    %v554 = vpop.permute.xlu0 %553
    %v556 = vsel %vm103, %v554, 0
    %558 = vmatprep.subr.bf16.mxu0 0
    %559 = vmatpush1.bf16.msra.mxu0 0
    %560 = vmatprep.subr.bf16.mxu0 0
    %561 = vmatpush1.bf16.msra.mxu0 0
    %562 = vmatprep.subr.bf16.mxu0 0
    %563 = vmatpush1.bf16.msra.mxu0 0
    %564 = vmatprep.subr.bf16.mxu0 0
    %565 = vmatpush1.bf16.msra.mxu0 0
    %566 = vmatprep.subr.bf16.mxu0 0
    %567 = vmatpush1.bf16.msra.mxu0 0
    %568 = vmatprep.subr.bf16.mxu0 0
    %569 = vmatpush1.bf16.msra.mxu0 0
    %570 = vmatprep.subr.bf16.mxu0 0
    %571 = vmatpush1.bf16.msra.mxu0 %v160
    %572 = vmatprep.subr.bf16.mxu0 0
    %573 = vmatpush1.bf16.msra.mxu0 %v159
    %574 = vmatprep.subr.bf16.mxu0 0
    %575 = vmatpush2.bf16.msra.mxu0 0
    %576 = vmatprep.subr.bf16.mxu0 0
    %577 = vmatpush2.bf16.msra.mxu0 0
    %578 = vmatprep.subr.bf16.mxu0 0
    %579 = vmatpush2.bf16.msra.mxu0 0
    %580 = vmatprep.subr.bf16.mxu0 0
    %581 = vmatpush2.bf16.msra.mxu0 0
    %582 = vmatprep.subr.bf16.mxu0 0
    %583 = vmatpush2.bf16.msra.mxu0 0
    %584 = vmatprep.subr.bf16.mxu0 0
    %585 = vmatpush2.bf16.msra.mxu0 0
    %586 = vmatprep.subr.bf16.mxu0 0
    %587 = vmatpush2.bf16.msra.mxu0 0
    %588 = vmatprep.subr.bf16.mxu0 0
    %589 = vmatpush2.bf16.msra.mxu0 0
    %590 = vmatprep.mubr.bf16.mxu0 0
    %591 = vmatmul.mubr.bf16.gmra.mxu0 %v556
    %v592 = vpop.f32.mrf.mxu0
    %v593 = vadd.f32 0.0, %v592
    %v594 = vpop.f32.mrf.mxu0
    %v595 = vpop.f32.mrf.mxu0
    %v596 = vpop.f32.mrf.mxu0
    %597 = vdwg.mxu0
    %v598 = vadd.f32 %v142, %v593
    %v599 = vxor.u32 %v598, 2147483648
    %v600 = vmul.f32 %v599, 1.442695
    %v601 = vpow.pop %v600
    %v602 = vadd.f32 %v601, 1.0
    %v603 = vrcp.pop %v602
    %v604 = vmul.f32 1.0, %v603
    %v605 = vtanh.pop %v598
    %v606 = vmul.f32 %v604, %v538
    %608 = vrot.lane.b32.xlu0 %v605, 32
    %v609 = vpop.permute.xlu0 %608
    %v611 = vmul.f32 %v604, %v609
    %613 = vrot.lane.b32.xlu0 %v611, 32
    %v614 = vpop.permute.xlu0 %613
    %v616 = vadd.f32 %v606, %v614
    %v617 = vtanh.pop %v616
    %619 = vrot.lane.b32.xlu0 %v617, 32
    %v620 = vpop.permute.xlu0 %619
    %v622 = vmul.f32 %v604, %v620
    %624 = vrot.lane.b32.xlu0 %v622, 64
    %v625 = vpop.permute.xlu0 %624
    %627 = vst.msk [vmem:[#allocation2 + $0x5] sm:$0x1] %vm235, %v625
    %628 = vst.msk [vmem:[#allocation2 + $0xc] sm:$0x2] %vm237, %v625
    %v629 = vpack.c.bf16 %v622, %v622
    %631 = vrot.lane.b32.xlu0 %v629, 64
    %v632 = vpop.permute.xlu0 %631
    %v634 = vsel %vm103, %v632, 0
    %636 = vmatprep.subr.bf16.mxu0 0
    %637 = vmatpush1.bf16.msra.mxu0 0
    %638 = vmatprep.subr.bf16.mxu0 0
    %639 = vmatpush1.bf16.msra.mxu0 0
    %640 = vmatprep.subr.bf16.mxu0 0
    %641 = vmatpush1.bf16.msra.mxu0 0
    %642 = vmatprep.subr.bf16.mxu0 0
    %643 = vmatpush1.bf16.msra.mxu0 0
    %644 = vmatprep.subr.bf16.mxu0 0
    %645 = vmatpush1.bf16.msra.mxu0 0
    %646 = vmatprep.subr.bf16.mxu0 0
    %647 = vmatpush1.bf16.msra.mxu0 0
    %648 = vmatprep.subr.bf16.mxu0 0
    %649 = vmatpush1.bf16.msra.mxu0 %v160
    %650 = vmatprep.subr.bf16.mxu0 0
    %651 = vmatpush1.bf16.msra.mxu0 %v159
    %652 = vmatprep.subr.bf16.mxu0 0
    %653 = vmatpush2.bf16.msra.mxu0 0
    %654 = vmatprep.subr.bf16.mxu0 0
    %655 = vmatpush2.bf16.msra.mxu0 0
    %656 = vmatprep.subr.bf16.mxu0 0
    %657 = vmatpush2.bf16.msra.mxu0 0
    %658 = vmatprep.subr.bf16.mxu0 0
    %659 = vmatpush2.bf16.msra.mxu0 0
    %660 = vmatprep.subr.bf16.mxu0 0
    %661 = vmatpush2.bf16.msra.mxu0 0
    %662 = vmatprep.subr.bf16.mxu0 0
    %663 = vmatpush2.bf16.msra.mxu0 0
    %664 = vmatprep.subr.bf16.mxu0 0
    %665 = vmatpush2.bf16.msra.mxu0 0
    %666 = vmatprep.subr.bf16.mxu0 0
    %667 = vmatpush2.bf16.msra.mxu0 0
    %668 = vmatprep.mubr.bf16.mxu0 0
    %669 = vmatmul.mubr.bf16.gmra.mxu0 %v634
    %v670 = vpop.f32.mrf.mxu0
    %v671 = vadd.f32 0.0, %v670
    %v672 = vpop.f32.mrf.mxu0
    %v673 = vpop.f32.mrf.mxu0
    %v674 = vpop.f32.mrf.mxu0
    %675 = vdwg.mxu0
    %v676 = vadd.f32 %v142, %v671
    %v677 = vxor.u32 %v676, 2147483648
    %v678 = vmul.f32 %v677, 1.442695
    %v679 = vpow.pop %v678
    %v680 = vadd.f32 %v679, 1.0
    %v681 = vrcp.pop %v680
    %v682 = vmul.f32 1.0, %v681
    %v683 = vtanh.pop %v676
    %v684 = vmul.f32 %v682, %v616
    %686 = vrot.lane.b32.xlu0 %v683, 32
    %v687 = vpop.permute.xlu0 %686
    %v689 = vmul.f32 %v682, %v687
    %691 = vrot.lane.b32.xlu0 %v689, 32
    %v692 = vpop.permute.xlu0 %691
    %v694 = vadd.f32 %v684, %v692
    %v695 = vtanh.pop %v694
    %697 = vrot.lane.b32.xlu0 %v695, 32
    %v698 = vpop.permute.xlu0 %697
    %v700 = vmul.f32 %v682, %v698
    %702 = vrot.lane.b32.xlu0 %v700, 64
    %v703 = vpop.permute.xlu0 %702
    %705 = vst.msk [vmem:[#allocation2 + $0x6] sm:$0x1] %vm235, %v703
    %706 = vst.msk [vmem:[#allocation2 + $0xd] sm:$0x2] %vm237, %v703
    %v707 = vpack.c.bf16 %v700, %v700
    %709 = vrot.lane.b32.xlu0 %v707, 64
    %v710 = vpop.permute.xlu0 %709
    %v712 = vsel %vm103, %v710, 0
    %714 = vmatprep.subr.bf16.mxu0 0
    %715 = vmatpush1.bf16.msra.mxu0 0
    %716 = vmatprep.subr.bf16.mxu0 0
    %717 = vmatpush1.bf16.msra.mxu0 0
    %718 = vmatprep.subr.bf16.mxu0 0
    %719 = vmatpush1.bf16.msra.mxu0 0
    %720 = vmatprep.subr.bf16.mxu0 0
    %721 = vmatpush1.bf16.msra.mxu0 0
    %722 = vmatprep.subr.bf16.mxu0 0
    %723 = vmatpush1.bf16.msra.mxu0 0
    %724 = vmatprep.subr.bf16.mxu0 0
    %725 = vmatpush1.bf16.msra.mxu0 0
    %726 = vmatprep.subr.bf16.mxu0 0
    %727 = vmatpush1.bf16.msra.mxu0 %v160
    %728 = vmatprep.subr.bf16.mxu0 0
    %729 = vmatpush1.bf16.msra.mxu0 %v159
    %730 = vmatprep.subr.bf16.mxu0 0
    %731 = vmatpush2.bf16.msra.mxu0 0
    %732 = vmatprep.subr.bf16.mxu0 0
    %733 = vmatpush2.bf16.msra.mxu0 0
    %734 = vmatprep.subr.bf16.mxu0 0
    %735 = vmatpush2.bf16.msra.mxu0 0
    %736 = vmatprep.subr.bf16.mxu0 0
    %737 = vmatpush2.bf16.msra.mxu0 0
    %738 = vmatprep.subr.bf16.mxu0 0
    %739 = vmatpush2.bf16.msra.mxu0 0
    %740 = vmatprep.subr.bf16.mxu0 0
    %741 = vmatpush2.bf16.msra.mxu0 0
    %742 = vmatprep.subr.bf16.mxu0 0
    %743 = vmatpush2.bf16.msra.mxu0 0
    %744 = vmatprep.subr.bf16.mxu0 0
    %745 = vmatpush2.bf16.msra.mxu0 0
    %746 = vmatprep.mubr.bf16.mxu0 0
    %747 = vmatmul.mubr.bf16.gmra.mxu0 %v712
    %v748 = vpop.f32.mrf.mxu0
    %v749 = vadd.f32 0.0, %v748
    %v750 = vpop.f32.mrf.mxu0
    %v751 = vpop.f32.mrf.mxu0
    %v752 = vpop.f32.mrf.mxu0
    %753 = vdwg.mxu0
    %v754 = vadd.f32 %v142, %v749
    %v755 = vxor.u32 %v754, 2147483648
    %v756 = vmul.f32 %v755, 1.442695
    %v757 = vpow.pop %v756
    %v758 = vadd.f32 %v757, 1.0
    %v759 = vrcp.pop %v758
    %v760 = vmul.f32 1.0, %v759
    %v761 = vtanh.pop %v754
    %v762 = vmul.f32 %v760, %v694
    %764 = vrot.lane.b32.xlu0 %v761, 32
    %v765 = vpop.permute.xlu0 %764
    %v767 = vmul.f32 %v760, %v765
    %769 = vrot.lane.b32.xlu0 %v767, 32
    %v770 = vpop.permute.xlu0 %769
    %v772 = vadd.f32 %v762, %v770
    %v773 = vtanh.pop %v772
    %775 = vrot.lane.b32.xlu0 %v773, 32
    %v776 = vpop.permute.xlu0 %775
    %v778 = vmul.f32 %v760, %v776
    %780 = vrot.lane.b32.xlu0 %v778, 64
    %v781 = vpop.permute.xlu0 %780
    %783 = vst.msk [vmem:[#allocation2 + $0x7] sm:$0x1] %vm235, %v781
    %784 = vst.msk [vmem:[#allocation2 + $0xe] sm:$0x2] %vm237, %v781
    %v785 = vld [vmem:[#allocation2] sm:$0xff]
    %v786 = vld [vmem:[#allocation2 + $0x8] sm:$0xff]
    %v787 = vpack.c.bf16 %v786, %v785
    %v788 = vld [vmem:[#allocation9] sm:$0xf]
    %v789 = vld [vmem:[#allocation9 + $0x4] sm:$0xf]
    %v790 = vld [vmem:[#allocation9 + $0x8] sm:$0xf]
    %v791 = vld [vmem:[#allocation9 + $0xc] sm:$0xf]
    %v792 = vld [vmem:[%s5] sm:$0x1]
    %v794 = vlaneseq
    %v795 = vshrl.u32 %v794, 7
    %v796 = vsub.s32 0, %v795
    %v797 = vrot.slane %v792, %v796
    %v803 = vunpack.c.l.b16 %v788
    %v804 = vunpack.c.l.b16 %v789
    %v805 = vunpack.c.l.b16 %v790
    %v806 = vunpack.c.l.b16 %v791
    %v807 = vpack.c.b16 %v804, %v803
    %v808 = vpack.c.b16 %v806, %v805
    %v812 = vsel %vm103, %v787, 0
    %814 = vmatprep.subr.bf16.mxu0 0
    %815 = vmatpush1.bf16.msra.mxu0 0
    %816 = vmatprep.subr.bf16.mxu0 0
    %817 = vmatpush1.bf16.msra.mxu0 0
    %818 = vmatprep.subr.bf16.mxu0 0
    %819 = vmatpush1.bf16.msra.mxu0 0
    %820 = vmatprep.subr.bf16.mxu0 0
    %821 = vmatpush1.bf16.msra.mxu0 0
    %822 = vmatprep.subr.bf16.mxu0 0
    %823 = vmatpush1.bf16.msra.mxu0 0
    %824 = vmatprep.subr.bf16.mxu0 0
    %825 = vmatpush1.bf16.msra.mxu0 0
    %826 = vmatprep.subr.bf16.mxu0 0
    %827 = vmatpush1.bf16.msra.mxu0 %v808
    %828 = vmatprep.subr.bf16.mxu0 0
    %829 = vmatpush1.bf16.msra.mxu0 %v807
    %830 = vmatprep.subr.bf16.mxu0 0
    %831 = vmatpush2.bf16.msra.mxu0 0
    %832 = vmatprep.subr.bf16.mxu0 0
    %833 = vmatpush2.bf16.msra.mxu0 0
    %834 = vmatprep.subr.bf16.mxu0 0
    %835 = vmatpush2.bf16.msra.mxu0 0
    %836 = vmatprep.subr.bf16.mxu0 0
    %837 = vmatpush2.bf16.msra.mxu0 0
    %838 = vmatprep.subr.bf16.mxu0 0
    %839 = vmatpush2.bf16.msra.mxu0 0
    %840 = vmatprep.subr.bf16.mxu0 0
    %841 = vmatpush2.bf16.msra.mxu0 0
    %842 = vmatprep.subr.bf16.mxu0 0
    %843 = vmatpush2.bf16.msra.mxu0 0
    %844 = vmatprep.subr.bf16.mxu0 0
    %845 = vmatpush2.bf16.msra.mxu0 0
    %846 = vmatprep.mubr.bf16.mxu0 0
    %847 = vmatmul.mubr.bf16.gmra.mxu0 %v812
    %v848 = vpop.f32.mrf.mxu0
    %v849 = vadd.f32 %v797, %v848
    %v850 = vpop.f32.mrf.mxu0
    %v851 = vpop.f32.mrf.mxu0
    %v852 = vadd.f32 %v797, %v851
    %v853 = vpop.f32.mrf.mxu0
    %854 = vdwg.mxu0
    %855 = vst [vmem:[#allocation11] sm:$0xff] %v849
    %856 = vst [vmem:[#allocation11 + $0x8] sm:$0xff] %v852
    // Predicated region
    $region42: #{lstm_decoder_forward.1} parent=1 // pred_check
      _
    $region43: #{lstm_decoder_forward.1} parent=1 // pred_check_branch
      %858 = sbr.rel (0) target = $region45
    $region44: #{lstm_decoder_forward.1} parent=1 // pred_region
      %s860 = ssub.s32 256, 256
      %861 = vsyncadd [#allocation5], %s860
      %s862 = sshll.u32 [#allocation11], 4
      %s863 = int_to_ptr.vmem [resolvable:$true] %s862
      %868 = dma.vmem_to_hbm [thread:$0]  %s863, 256, %s6, [#allocation5], 128, 128, 8
    $region45: #{lstm_decoder_forward.1} parent=1 // pred_fallthru
      _
    // Predicated region
    $region46: #{lstm_decoder_forward.1} parent=1 // pred_check
      _
    $region47: #{lstm_decoder_forward.1} parent=1 // pred_check_branch
      %870 = sbr.rel (0) target = $region49
    $region48: #{lstm_decoder_forward.1} parent=1 // pred_region
      %871 = dma.done [#allocation5], 256
    $region49: #{lstm_decoder_forward.1} parent=1 // pred_fallthru
      _
    %872 = vsyncpa [#allocation4], 1
    %873 = vsyncpa [#allocation7], 1
    %874 = vsyncpa [#allocation10], 1
    %875 = vsyncpa [#allocation5], 1

</llo_original>
